<compile_context>
chip_gen: v5e
topology: v5e:2x2
jax: 0.10.0
libtpu: 0.0.40
codegen_flags: <defaults>
</compile_context>

<pallas_src>
import math
import jax
import jax.numpy as jnp
from jax.experimental import pallas as pl
from jax.experimental.pallas import tpu as pltpu

# ---- static module configuration (mirrors __init__ args) --------------------
MAX_OUTPUT = 30
HIDDEN = 32                       # hidden_dim (shrunk from 256 for a small test)
OUT = 8                           # `out`
N = OUT                           # batch dim must equal `out` for w8 @ result
COMBINATION = ("013", "12", "203")
LN_EPS = 1e-5


def _layernorm(v, gamma, beta, eps=LN_EPS):
    # gamma / beta are pre-broadcast to v.shape by the caller.
    mean = jnp.mean(v, axis=-1, keepdims=True)
    var = jnp.mean((v - mean) ** 2, axis=-1, keepdims=True)
    return (v - mean) * jax.lax.rsqrt(var + eps) * gamma + beta


def _sublayer_kernel(x_ref, w1_ref, wf_ref, w8_ref, vec_ref, out_ref):
    x = x_ref[...]                    # (N, HIDDEN)
    w1 = w1_ref[...]                  # (HIDDEN, HIDDEN)
    w_fused = wf_ref[...]             # (HIDDEN, OUT)   = w61w.T @ w62w.T
    w8 = w8_ref[...]                  # (MAX_OUTPUT, OUT), already sliced [:, :OUT]
    vecs = vec_ref[...]               # (8, HIDDEN) packed slab

    # Unpack + hoist all broadcasts once (outside the unrolled loops).
    w0w1_b = jnp.broadcast_to(vecs[0:1, :], (N, HIDDEN))          # w0 @ w1
    ln3g_b = jnp.broadcast_to(vecs[1:2, :], (N, HIDDEN))
    ln3b_b = jnp.broadcast_to(vecs[2:3, :], (N, HIDDEN))
    bfus_b = jnp.broadcast_to(vecs[3:4, 0:OUT], (N, OUT))          # fused head bias
    ln6g_b = jnp.broadcast_to(vecs[4:5, 0:OUT], (MAX_OUTPUT, OUT))
    ln6b_b = jnp.broadcast_to(vecs[5:6, 0:OUT], (MAX_OUTPUT, OUT))

    last_output = jnp.zeros_like(x)
    result = None
    for combo in COMBINATION:                      # static unroll over combinations
        output = x + last_output
        for a in combo:                            # static unroll over op string
            if a == '0':
                output = output + w0w1_b
            elif a == '1':
                output = jnp.dot(output, w1, preferred_element_type=jnp.float32)
            elif a == '2':
                output = jnp.exp(_layernorm(output, ln3g_b, ln3b_b))
            elif a == '3':
                output = jnp.maximum(output, 0.0)
        last_output = output
        # fused two-layer head WITHOUT bias (bias is pulled out of the max):
        #   (output @ w61w.T + w61b) @ w62w.T + w62b == output @ w_fused + b_fused
        o = jnp.dot(output, w_fused, preferred_element_type=jnp.float32)
        result = o if result is None else jnp.maximum(result, o)
    result = result + bfus_b                       # add fused bias once (valid: max_i(M_i)+b)

    # residual / final-projection branches are static config decisions
    total_out = x
    if HIDDEN == OUT:
        result = result + total_out
        total_out = total_out + result
    if OUT == MAX_OUTPUT:                           # result.shape[1] == MAX_OUTPUT
        if HIDDEN == OUT:
            result = jnp.dot(w8, result, preferred_element_type=jnp.float32) + total_out
        else:
            result = jnp.dot(w8, result, preferred_element_type=jnp.float32) + result
    else:
        result = jnp.dot(w8, result, preferred_element_type=jnp.float32)

    out_ref[...] = _layernorm(result, ln6g_b, ln6b_b)


def test_sublayer_forward(x, params):
    w0, w1, w61w, w61b, w62w, w62b, w8, ln3g, ln3b, ln6g, ln6b = params
    assert x.shape == (N, HIDDEN)
    assert w8.shape == (MAX_OUTPUT, OUT)

    # ---- parameter-only fusions (done once, outside the kernel) -------------
    w0w1 = w0 @ w1                                  # (1, HIDDEN)
    w_fused = w61w.T @ w62w.T                       # (HIDDEN, OUT)
    b_fused = w61b @ w62w.T + w62b                  # (OUT,)
    w8s = w8[:, :OUT]                               # explicit static slice

    # ---- pack all small per-feature vectors into one (8, HIDDEN) slab -------
    vecs = jnp.zeros((8, HIDDEN), jnp.float32)
    vecs = vecs.at[0, :].set(w0w1[0])
    vecs = vecs.at[1, :].set(ln3g)
    vecs = vecs.at[2, :].set(ln3b)
    vecs = vecs.at[3, :OUT].set(b_fused)
    vecs = vecs.at[4, :OUT].set(ln6g)
    vecs = vecs.at[5, :OUT].set(ln6b)

    vmem = pltpu.MemorySpace.VMEM
    return pl.pallas_call(
        _sublayer_kernel,
        in_specs=[pl.BlockSpec(memory_space=vmem)] * 5,
        out_specs=pl.BlockSpec(memory_space=vmem),
        out_shape=jax.ShapeDtypeStruct((MAX_OUTPUT, OUT), jnp.float32),
    )(x, w1, w_fused, w8s, vecs)


# ----------------------- pure-JAX reference (for checking) -------------------
def _reference(x, params):
    def ln(v, g, b, eps=LN_EPS):
        mean = jnp.mean(v, axis=-1, keepdims=True)
        var = jnp.mean((v - mean) ** 2, axis=-1, keepdims=True)
        return (v - mean) * jax.lax.rsqrt(var + eps) * g + b

    w0, w1, w61w, w61b, w62w, w62b, w8, ln3g, ln3b, ln6g, ln6b = params
    last_output = jnp.zeros_like(x)
    results = []
    for combo in COMBINATION:
        output = x + last_output
        for a in combo:
            if a == '0':
                output = output + w0 @ w1
            elif a == '1':
                output = output @ w1
            elif a == '2':
                output = jnp.exp(ln(output, ln3g, ln3b))
            elif a == '3':
                output = jnp.maximum(output, 0.0)
        last_output = output
        o = output @ w61w.T + w61b
        o = o @ w62w.T + w62b
        results.append(o)
    result = jnp.max(jnp.stack(results, axis=-1), axis=-1)
    total_out = x
    if HIDDEN == OUT:
        result = result + total_out
        total_out = total_out + result
    if result.shape[1] == MAX_OUTPUT:
        if HIDDEN == OUT:
            result = w8[:, :result.shape[1]] @ result + total_out
        else:
            result = w8[:, :result.shape[1]] @ result + result
    else:
        result = w8[:, :result.shape[1]] @ result
    return ln(result, ln6g, ln6b)


def _xavier_normal(key, shape):
    fan_out, fan_in = shape[0], shape[1]
    std = math.sqrt(2.0 / (fan_in + fan_out))
    return std * jax.random.normal(key, shape, jnp.float32)


if __name__ == "__main__":
    key = jax.random.PRNGKey(0)
    ks = jax.random.split(key, 8)

    w0 = _xavier_normal(ks[0], (1, HIDDEN))
    w1 = _xavier_normal(ks[1], (HIDDEN, HIDDEN))
    w61w = _xavier_normal(ks[2], (HIDDEN, HIDDEN))            # Linear(hidden, hidden).weight
    w61b = 0.01 * jax.random.normal(ks[3], (HIDDEN,), jnp.float32)
    w62w = _xavier_normal(ks[4], (OUT, HIDDEN))               # Linear(hidden, out).weight
    w62b = 0.01 * jax.random.normal(ks[5], (OUT,), jnp.float32)
    w8 = _xavier_normal(ks[6], (MAX_OUTPUT, OUT))
    ln3g = jnp.ones((HIDDEN,), jnp.float32)
    ln3b = jnp.zeros((HIDDEN,), jnp.float32)
    ln6g = jnp.ones((OUT,), jnp.float32)
    ln6b = jnp.zeros((OUT,), jnp.float32)
    params = (w0, w1, w61w, w61b, w62w, w62b, w8, ln3g, ln3b, ln6g, ln6b)

    x = jax.random.normal(ks[7], (N, HIDDEN), jnp.float32)

    out = test_sublayer_forward(x, params)
    out = jax.block_until_ready(out)

    ref = _reference(x, params)
    assert out.shape == (MAX_OUTPUT, OUT), out.shape
    assert jnp.allclose(out, ref, rtol=1e-4, atol=1e-4), float(jnp.max(jnp.abs(out - ref)))

    print("KERNEL_OK")
</pallas_src>

<mosaic_0001>
module attributes {stable_mosaic.version = 11 : i64} {
  func.func @_sublayer_kernel(%arg0: memref<8x32xf32, #tpu.memory_space<vmem>>, %arg1: memref<32x32xf32, #tpu.memory_space<vmem>>, %arg2: memref<32x8xf32, #tpu.memory_space<vmem>>, %arg3: memref<30x8xf32, #tpu.memory_space<vmem>>, %arg4: memref<8x32xf32, #tpu.memory_space<vmem>>, %arg5: memref<30x8xf32, #tpu.memory_space<vmem>>) attributes {dimension_semantics = [], scalar_prefetch = 0 : i64, scratch_operands = 0 : i64, tpu.core_type = #tpu.core_type<tc>} {
    %c0 = arith.constant 0 : index
    %c0_0 = arith.constant 0 : index
    %0 = vector.load %arg0[%c0, %c0_0] : memref<8x32xf32, #tpu.memory_space<vmem>>, vector<8x32xf32>
    %c0_1 = arith.constant 0 : index
    %c0_2 = arith.constant 0 : index
    %1 = vector.load %arg1[%c0_1, %c0_2] : memref<32x32xf32, #tpu.memory_space<vmem>>, vector<32x32xf32>
    %c0_3 = arith.constant 0 : index
    %c0_4 = arith.constant 0 : index
    %2 = vector.load %arg2[%c0_3, %c0_4] : memref<32x8xf32, #tpu.memory_space<vmem>>, vector<32x8xf32>
    %c0_5 = arith.constant 0 : index
    %c0_6 = arith.constant 0 : index
    %3 = vector.load %arg3[%c0_5, %c0_6] : memref<30x8xf32, #tpu.memory_space<vmem>>, vector<30x8xf32>
    %c0_7 = arith.constant 0 : index
    %c0_8 = arith.constant 0 : index
    %4 = vector.load %arg4[%c0_7, %c0_8] : memref<8x32xf32, #tpu.memory_space<vmem>>, vector<8x32xf32>
    %5 = vector.extract_strided_slice %4 {offsets = [0, 0], sizes = [1, 32], strides = [1, 1]} : vector<8x32xf32> to vector<1x32xf32>
    %6 = vector.shape_cast %5 : vector<1x32xf32> to vector<1x32xf32>
    %7 = vector.broadcast %6 : vector<1x32xf32> to vector<8x32xf32>
    %8 = vector.extract_strided_slice %4 {offsets = [1, 0], sizes = [1, 32], strides = [1, 1]} : vector<8x32xf32> to vector<1x32xf32>
    %9 = vector.shape_cast %8 : vector<1x32xf32> to vector<1x32xf32>
    %10 = vector.broadcast %9 : vector<1x32xf32> to vector<8x32xf32>
    %11 = vector.extract_strided_slice %4 {offsets = [2, 0], sizes = [1, 32], strides = [1, 1]} : vector<8x32xf32> to vector<1x32xf32>
    %12 = vector.shape_cast %11 : vector<1x32xf32> to vector<1x32xf32>
    %13 = vector.broadcast %12 : vector<1x32xf32> to vector<8x32xf32>
    %14 = vector.extract_strided_slice %4 {offsets = [3, 0], sizes = [1, 8], strides = [1, 1]} : vector<8x32xf32> to vector<1x8xf32>
    %15 = vector.shape_cast %14 : vector<1x8xf32> to vector<1x8xf32>
    %16 = vector.broadcast %15 : vector<1x8xf32> to vector<8x8xf32>
    %17 = vector.extract_strided_slice %4 {offsets = [4, 0], sizes = [1, 8], strides = [1, 1]} : vector<8x32xf32> to vector<1x8xf32>
    %18 = vector.shape_cast %17 : vector<1x8xf32> to vector<1x8xf32>
    %19 = vector.broadcast %18 : vector<1x8xf32> to vector<30x8xf32>
    %20 = vector.extract_strided_slice %4 {offsets = [5, 0], sizes = [1, 8], strides = [1, 1]} : vector<8x32xf32> to vector<1x8xf32>
    %21 = vector.shape_cast %20 : vector<1x8xf32> to vector<1x8xf32>
    %22 = vector.broadcast %21 : vector<1x8xf32> to vector<30x8xf32>
    %cst = arith.constant 0.000000e+00 : f32
    %23 = vector.broadcast %cst : f32 to vector<8x32xf32>
    %24 = arith.addf %0, %23 : vector<8x32xf32>
    %25 = arith.addf %24, %7 : vector<8x32xf32>
    %cst_9 = arith.constant dense<0.000000e+00> : vector<8x32xf32>
    %26 = tpu.matmul %25, %1, %cst_9 {dimension_numbers = #tpu.dot_dimension_numbers<[1], [0], [0], [1], [0, 0, 1, 1], [], []>} : vector<8x32xf32>, vector<32x32xf32>, vector<8x32xf32> -> vector<8x32xf32>
    %cst_10 = arith.constant 0.000000e+00 : f32
    %27 = vector.broadcast %cst_10 : f32 to vector<8x32xf32>
    %28 = arith.maximumf %26, %27 : vector<8x32xf32>
    %cst_11 = arith.constant dense<0.000000e+00> : vector<8x8xf32>
    %29 = tpu.matmul %28, %2, %cst_11 {dimension_numbers = #tpu.dot_dimension_numbers<[1], [0], [0], [1], [0, 0, 1, 1], [], []>} : vector<8x32xf32>, vector<32x8xf32>, vector<8x8xf32> -> vector<8x8xf32>
    %30 = arith.addf %0, %28 : vector<8x32xf32>
    %cst_12 = arith.constant dense<0.000000e+00> : vector<8x32xf32>
    %31 = tpu.matmul %30, %1, %cst_12 {dimension_numbers = #tpu.dot_dimension_numbers<[1], [0], [0], [1], [0, 0, 1, 1], [], []>} : vector<8x32xf32>, vector<32x32xf32>, vector<8x32xf32> -> vector<8x32xf32>
    %cst_13 = arith.constant dense<0.000000e+00> : vector<8xf32>
    %32 = vector.multi_reduction <add>, %31, %cst_13 [1] : vector<8x32xf32> to vector<8xf32>
    %33 = vector.shape_cast %32 : vector<8xf32> to vector<8x1xf32>
    %cst_14 = arith.constant 3.200000e+01 : f32
    %34 = vector.broadcast %cst_14 : f32 to vector<8x1xf32>
    %35 = arith.divf %33, %34 : vector<8x1xf32>
    %36 = vector.broadcast %35 : vector<8x1xf32> to vector<8x32xf32>
    %37 = arith.subf %31, %36 : vector<8x32xf32>
    %38 = arith.mulf %37, %37 : vector<8x32xf32>
    %cst_15 = arith.constant dense<0.000000e+00> : vector<8xf32>
    %39 = vector.multi_reduction <add>, %38, %cst_15 [1] : vector<8x32xf32> to vector<8xf32>
    %40 = vector.shape_cast %39 : vector<8xf32> to vector<8x1xf32>
    %cst_16 = arith.constant 3.200000e+01 : f32
    %41 = vector.broadcast %cst_16 : f32 to vector<8x1xf32>
    %42 = arith.divf %40, %41 : vector<8x1xf32>
    %43 = vector.broadcast %35 : vector<8x1xf32> to vector<8x32xf32>
    %44 = arith.subf %31, %43 : vector<8x32xf32>
    %cst_17 = arith.constant 9.99999974E-6 : f32
    %45 = vector.broadcast %cst_17 : f32 to vector<8x1xf32>
    %46 = arith.addf %42, %45 : vector<8x1xf32>
    %47 = math.rsqrt %46 : vector<8x1xf32>
    %48 = vector.broadcast %47 : vector<8x1xf32> to vector<8x32xf32>
    %49 = arith.mulf %44, %48 : vector<8x32xf32>
    %50 = arith.mulf %49, %10 : vector<8x32xf32>
    %51 = arith.addf %50, %13 : vector<8x32xf32>
    %52 = math.exp %51 : vector<8x32xf32>
    %cst_18 = arith.constant dense<0.000000e+00> : vector<8x8xf32>
    %53 = tpu.matmul %52, %2, %cst_18 {dimension_numbers = #tpu.dot_dimension_numbers<[1], [0], [0], [1], [0, 0, 1, 1], [], []>} : vector<8x32xf32>, vector<32x8xf32>, vector<8x8xf32> -> vector<8x8xf32>
    %54 = arith.maximumf %29, %53 : vector<8x8xf32>
    %55 = arith.addf %0, %52 : vector<8x32xf32>
    %cst_19 = arith.constant dense<0.000000e+00> : vector<8xf32>
    %56 = vector.multi_reduction <add>, %55, %cst_19 [1] : vector<8x32xf32> to vector<8xf32>
    %57 = vector.shape_cast %56 : vector<8xf32> to vector<8x1xf32>
    %cst_20 = arith.constant 3.200000e+01 : f32
    %58 = vector.broadcast %cst_20 : f32 to vector<8x1xf32>
    %59 = arith.divf %57, %58 : vector<8x1xf32>
    %60 = vector.broadcast %59 : vector<8x1xf32> to vector<8x32xf32>
    %61 = arith.subf %55, %60 : vector<8x32xf32>
    %62 = arith.mulf %61, %61 : vector<8x32xf32>
    %cst_21 = arith.constant dense<0.000000e+00> : vector<8xf32>
    %63 = vector.multi_reduction <add>, %62, %cst_21 [1] : vector<8x32xf32> to vector<8xf32>
    %64 = vector.shape_cast %63 : vector<8xf32> to vector<8x1xf32>
    %cst_22 = arith.constant 3.200000e+01 : f32
    %65 = vector.broadcast %cst_22 : f32 to vector<8x1xf32>
    %66 = arith.divf %64, %65 : vector<8x1xf32>
    %67 = vector.broadcast %59 : vector<8x1xf32> to vector<8x32xf32>
    %68 = arith.subf %55, %67 : vector<8x32xf32>
    %cst_23 = arith.constant 9.99999974E-6 : f32
    %69 = vector.broadcast %cst_23 : f32 to vector<8x1xf32>
    %70 = arith.addf %66, %69 : vector<8x1xf32>
    %71 = math.rsqrt %70 : vector<8x1xf32>
    %72 = vector.broadcast %71 : vector<8x1xf32> to vector<8x32xf32>
    %73 = arith.mulf %68, %72 : vector<8x32xf32>
    %74 = arith.mulf %73, %10 : vector<8x32xf32>
    %75 = arith.addf %74, %13 : vector<8x32xf32>
    %76 = math.exp %75 : vector<8x32xf32>
    %77 = arith.addf %76, %7 : vector<8x32xf32>
    %cst_24 = arith.constant 0.000000e+00 : f32
    %78 = vector.broadcast %cst_24 : f32 to vector<8x32xf32>
    %79 = arith.maximumf %77, %78 : vector<8x32xf32>
    %cst_25 = arith.constant dense<0.000000e+00> : vector<8x8xf32>
    %80 = tpu.matmul %79, %2, %cst_25 {dimension_numbers = #tpu.dot_dimension_numbers<[1], [0], [0], [1], [0, 0, 1, 1], [], []>} : vector<8x32xf32>, vector<32x8xf32>, vector<8x8xf32> -> vector<8x8xf32>
    %81 = arith.maximumf %54, %80 : vector<8x8xf32>
    %82 = arith.addf %81, %16 : vector<8x8xf32>
    %cst_26 = arith.constant dense<0.000000e+00> : vector<30x8xf32>
    %83 = tpu.matmul %3, %82, %cst_26 {dimension_numbers = #tpu.dot_dimension_numbers<[1], [0], [0], [1], [0, 0, 1, 1], [], []>} : vector<30x8xf32>, vector<8x8xf32>, vector<30x8xf32> -> vector<30x8xf32>
    %cst_27 = arith.constant dense<0.000000e+00> : vector<30xf32>
    %84 = vector.multi_reduction <add>, %83, %cst_27 [1] : vector<30x8xf32> to vector<30xf32>
    %85 = vector.shape_cast %84 : vector<30xf32> to vector<30x1xf32>
    %cst_28 = arith.constant 8.000000e+00 : f32
    %86 = vector.broadcast %cst_28 : f32 to vector<30x1xf32>
    %87 = arith.divf %85, %86 : vector<30x1xf32>
    %88 = vector.broadcast %87 : vector<30x1xf32> to vector<30x8xf32>
    %89 = arith.subf %83, %88 : vector<30x8xf32>
    %90 = arith.mulf %89, %89 : vector<30x8xf32>
    %cst_29 = arith.constant dense<0.000000e+00> : vector<30xf32>
    %91 = vector.multi_reduction <add>, %90, %cst_29 [1] : vector<30x8xf32> to vector<30xf32>
    %92 = vector.shape_cast %91 : vector<30xf32> to vector<30x1xf32>
    %cst_30 = arith.constant 8.000000e+00 : f32
    %93 = vector.broadcast %cst_30 : f32 to vector<30x1xf32>
    %94 = arith.divf %92, %93 : vector<30x1xf32>
    %95 = vector.broadcast %87 : vector<30x1xf32> to vector<30x8xf32>
    %96 = arith.subf %83, %95 : vector<30x8xf32>
    %cst_31 = arith.constant 9.99999974E-6 : f32
    %97 = vector.broadcast %cst_31 : f32 to vector<30x1xf32>
    %98 = arith.addf %94, %97 : vector<30x1xf32>
    %99 = math.rsqrt %98 : vector<30x1xf32>
    %100 = vector.broadcast %99 : vector<30x1xf32> to vector<30x8xf32>
    %101 = arith.mulf %96, %100 : vector<30x8xf32>
    %102 = arith.mulf %101, %19 : vector<30x8xf32>
    %103 = arith.addf %102, %22 : vector<30x8xf32>
    %c0_32 = arith.constant 0 : index
    %c0_33 = arith.constant 0 : index
    %104 = vector.load %arg5[%c0_32, %c0_33] : memref<30x8xf32, #tpu.memory_space<vmem>>, vector<30x8xf32>
    tpu.vector_store %arg5[%c0_32, %c0_33], %103 {strides = array<i32>} : memref<30x8xf32, #tpu.memory_space<vmem>>, vector<30x8xf32>,
    return
  }
}

</mosaic_0001>

<llo_original>
// kernel: tpu_custom_call.1
$region0: #{tpu_custom_call.1}
  #allocation0 [shape = 'u32[]', space=smem, size = 0x4, offset = 0x4, fixed_abs, tag = 'smem constant byte address 0x4 - core index']
  #allocation1 [shape = 'u32[72,128]{1,0:T(1,128)}', space=vmem, size = 0x9000, scoped, tag = 'internal scratch']
  %s0 = inlined_call_operand.vmem [shape: f32[8,32], index: 0, kind: input, shape index: {}]
  %s1 = inlined_call_operand.vmem [shape: f32[32,32], index: 1, kind: input, shape index: {}]
  %s2 = inlined_call_operand.vmem [shape: f32[32,8], index: 2, kind: input, shape index: {}]
  %s3 = inlined_call_operand.vmem [shape: f32[30,8], index: 3, kind: input, shape index: {}]
  %s4 = inlined_call_operand.vmem [shape: f32[8,32], index: 4, kind: input, shape index: {}]
  %s5 = inlined_call_operand.vmem [shape: f32[30,8], index: 5, kind: output, shape index: {}]
  %s6 = sld [smem:[#allocation0]]
  $region30: #{tpu_custom_call.1} parent=0
    _
  %s8 = ssub.s32 1, %s6
  %s9 = scalar_select 0, %s8, %s6
  // Predicated region
  $region2: #{tpu_custom_call.1} parent=0 // pred_check
    _
  $region3: #{tpu_custom_call.1} parent=0 // pred_check_branch
    %11 = sbr.rel (0) target = $region5
  $region4: #{tpu_custom_call.1} parent=0 // pred_region
    _
  $region5: #{tpu_custom_call.1} parent=0 // pred_fallthru
    _
  // Predicated region
  $region6: #{tpu_custom_call.1} parent=0 // pred_check
    _
  $region7: #{tpu_custom_call.1} parent=0 // pred_check_branch
    %13 = sbr.rel (0) target = $region9
  $region8: #{tpu_custom_call.1} parent=0 // pred_region
    _
  $region9: #{tpu_custom_call.1} parent=0 // pred_fallthru
    _
  // Predicated region
  $region10: #{tpu_custom_call.1} parent=0 // pred_check
    _
  $region11: #{tpu_custom_call.1} parent=0 // pred_check_branch
    %15 = sbr.rel (0) target = $region13
  $region12: #{tpu_custom_call.1} parent=0 // pred_region
    _
  $region13: #{tpu_custom_call.1} parent=0 // pred_fallthru
    _
  // Predicated region
  $region14: #{tpu_custom_call.1} parent=0 // pred_check
    _
  $region15: #{tpu_custom_call.1} parent=0 // pred_check_branch
    %17 = sbr.rel (0) target = $region17
  $region16: #{tpu_custom_call.1} parent=0 // pred_region
    _
  $region17: #{tpu_custom_call.1} parent=0 // pred_fallthru
    _
  // Predicated region
  $region18: #{tpu_custom_call.1} parent=0 // pred_check
    _
  $region19: #{tpu_custom_call.1} parent=0 // pred_check_branch
    %19 = sbr.rel (0) target = $region21
  $region20: #{tpu_custom_call.1} parent=0 // pred_region
    _
  $region21: #{tpu_custom_call.1} parent=0 // pred_fallthru
    _
  %v20 = vld [vmem:[%s0] sm:$0xff]
  %v21 = vld [vmem:[%s1] sm:$0xff]
  %v22 = vld [vmem:[%s1 + $0x8] sm:$0xff]
  %v23 = vld [vmem:[%s1 + $0x10] sm:$0xff]
  %v24 = vld [vmem:[%s1 + $0x18] sm:$0xff]
  %v25 = vld [vmem:[%s2] sm:$0xff]
  %v26 = vld [vmem:[%s2 + $0x8] sm:$0xff]
  %v27 = vld [vmem:[%s2 + $0x10] sm:$0xff]
  %v28 = vld [vmem:[%s2 + $0x18] sm:$0xff]
  %v29 = vld [vmem:[%s3] sm:$0xff]
  %v30 = vld [vmem:[%s3 + $0x8] sm:$0xff]
  %v31 = vld [vmem:[%s3 + $0x10] sm:$0xff]
  %v32 = vld [vmem:[%s3 + $0x18] sm:$0x3f]
  %v33 = vld [vmem:[%s4] sm:$0xff]
  %v34 = vperm.slane %v33, 0
  %v35 = vperm.slane %v33, 1
  %v36 = vperm.slane %v33, 2
  %v37 = vperm.slane %v33, 3
  %v38 = vperm.slane %v33, 4
  %v39 = vperm.slane %v33, 5
  %v40 = vadd.f32 %v20, 0.0
  %v41 = vadd.f32 %v40, %v34
  %vm42 = vcmask 261120
  %v44 = vsel %vm42, %v41, 0
  %46 = vmatpush.msra.mxu0 0.0
  %47 = vmatpush.msra.mxu0 0.0
  %48 = vmatpush.msra.mxu0 0.0
  %49 = vmatpush.msra.mxu0 0.0
  %50 = vmatpush.msra.mxu0 0.0
  %51 = vmatpush.msra.mxu0 0.0
  %52 = vmatpush.msra.mxu0 0.0
  %53 = vmatpush.msra.mxu0 0.0
  %54 = vmatpush.msra.mxu0 0.0
  %55 = vmatpush.msra.mxu0 0.0
  %56 = vmatpush.msra.mxu0 0.0
  %57 = vmatpush.msra.mxu0 0.0
  %58 = vmatpush.msra.mxu0 %v24
  %59 = vmatpush.msra.mxu0 %v23
  %60 = vmatpush.msra.mxu0 %v22
  %61 = vmatpush.msra.mxu0 %v21
  %62 = vmatmul.f32.gmra.mxu0 %v44
  %v63 = vpop.f32.mrf.mxu0
  %v64 = vadd.f32 0.0, %v63
  %65 = vdwg.mxu0
  %v66 = vmax.f32 %v64, 0.0
  %v68 = vsel %vm42, %v66, 0
  %70 = vmatpush.msra.mxu0 0.0
  %71 = vmatpush.msra.mxu0 0.0
  %72 = vmatpush.msra.mxu0 0.0
  %73 = vmatpush.msra.mxu0 0.0
  %74 = vmatpush.msra.mxu0 0.0
  %75 = vmatpush.msra.mxu0 0.0
  %76 = vmatpush.msra.mxu0 0.0
  %77 = vmatpush.msra.mxu0 0.0
  %78 = vmatpush.msra.mxu0 0.0
  %79 = vmatpush.msra.mxu0 0.0
  %80 = vmatpush.msra.mxu0 0.0
  %81 = vmatpush.msra.mxu0 0.0
  %82 = vmatpush.msra.mxu0 %v28
  %83 = vmatpush.msra.mxu0 %v27
  %84 = vmatpush.msra.mxu0 %v26
  %85 = vmatpush.msra.mxu0 %v25
  %86 = vmatmul.f32.gmra.mxu0 %v68
  %v87 = vpop.f32.mrf.mxu0
  %v88 = vadd.f32 0.0, %v87
  %89 = vdwg.mxu0
  %v90 = vadd.f32 %v20, %v66
  %v92 = vsel %vm42, %v90, 0
  %94 = vmatpush.msra.mxu0 0.0
  %95 = vmatpush.msra.mxu0 0.0
  %96 = vmatpush.msra.mxu0 0.0
  %97 = vmatpush.msra.mxu0 0.0
  %98 = vmatpush.msra.mxu0 0.0
  %99 = vmatpush.msra.mxu0 0.0
  %100 = vmatpush.msra.mxu0 0.0
  %101 = vmatpush.msra.mxu0 0.0
  %102 = vmatpush.msra.mxu0 0.0
  %103 = vmatpush.msra.mxu0 0.0
  %104 = vmatpush.msra.mxu0 0.0
  %105 = vmatpush.msra.mxu0 0.0
  %106 = vmatpush.msra.mxu0 %v24
  %107 = vmatpush.msra.mxu0 %v23
  %108 = vmatpush.msra.mxu0 %v22
  %109 = vmatpush.msra.mxu0 %v21
  %110 = vmatmul.f32.gmra.mxu0 %v92
  %v111 = vpop.f32.mrf.mxu0
  %v112 = vadd.f32 0.0, %v111
  %113 = vdwg.mxu0
  %v114 = vsel %vm42, %v112, 0.0
  %115 = vadd.xlane.f32.xlu0 %v114
  %v116 = vpop.xlane.xlu0 %115
  %v117 = vrcp.pop 32.0
  %v118 = vmul.f32 32.0, %v117
  %v119 = vsub.f32 1.0, %v118
  %v120 = vmul.f32 %v117, %v119
  %v121 = vadd.f32 %v117, %v120
  %vm122 = vweird.f32 %v117
  %v123 = vsel %vm122, %v117, %v121
  %v124 = vmul.f32 %v116, %v123
  %v125 = vsub.f32 %v112, %v124
  %v126 = vmul.f32 %v125, %v125
  %v127 = vsel %vm42, %v126, 0.0
  %128 = vadd.xlane.f32.xlu0 %v127
  %v129 = vpop.xlane.xlu0 %128
  %v130 = vmul.f32 %v129, %v123
  %v131 = vadd.f32 %v130, 1e-05
  %v132 = vrsqrt.pop %v131
  %v133 = vmul.f32 %v132, %v131
  %v134 = vmul.f32 %v133, %v132
  %v135 = vmul.f32 0.5, %v134
  %v136 = vsub.f32 1.5, %v135
  %v137 = vmul.f32 %v132, %v136
  %vm138 = vweird.f32 %v131
  %vm139 = vweird.f32 %v132
  %vm140 = vmor %vm138, %vm139
  %v141 = vsel %vm140, %v132, %v137
  %v142 = vmul.f32 %v125, %v141
  %v143 = vmul.f32 %v142, %v35
  %v144 = vadd.f32 %v143, %v36
  %v145 = vmul.f32 %v144, 1.442695
  %v146 = vpow.pop %v145
  %v148 = vsel %vm42, %v146, 0
  %150 = vmatpush.msra.mxu0 0.0
  %151 = vmatpush.msra.mxu0 0.0
  %152 = vmatpush.msra.mxu0 0.0
  %153 = vmatpush.msra.mxu0 0.0
  %154 = vmatpush.msra.mxu0 0.0
  %155 = vmatpush.msra.mxu0 0.0
  %156 = vmatpush.msra.mxu0 0.0
  %157 = vmatpush.msra.mxu0 0.0
  %158 = vmatpush.msra.mxu0 0.0
  %159 = vmatpush.msra.mxu0 0.0
  %160 = vmatpush.msra.mxu0 0.0
  %161 = vmatpush.msra.mxu0 0.0
  %162 = vmatpush.msra.mxu0 %v28
  %163 = vmatpush.msra.mxu0 %v27
  %164 = vmatpush.msra.mxu0 %v26
  %165 = vmatpush.msra.mxu0 %v25
  %166 = vmatmul.f32.gmra.mxu0 %v148
  %v167 = vpop.f32.mrf.mxu0
  %v168 = vadd.f32 0.0, %v167
  %169 = vdwg.mxu0
  %v170 = vmax.f32 %v88, %v168
  %v171 = vadd.f32 %v20, %v146
  %v172 = vsel %vm42, %v171, 0.0
  %173 = vadd.xlane.f32.xlu0 %v172
  %v174 = vpop.xlane.xlu0 %173
  %v175 = vmul.f32 %v174, %v123
  %v176 = vsub.f32 %v171, %v175
  %v177 = vmul.f32 %v176, %v176
  %v178 = vsel %vm42, %v177, 0.0
  %179 = vadd.xlane.f32.xlu0 %v178
  %v180 = vpop.xlane.xlu0 %179
  %v181 = vmul.f32 %v180, %v123
  %v182 = vadd.f32 %v181, 1e-05
  %v183 = vrsqrt.pop %v182
  %v184 = vmul.f32 %v183, %v182
  %v185 = vmul.f32 %v184, %v183
  %v186 = vmul.f32 0.5, %v185
  %v187 = vsub.f32 1.5, %v186
  %v188 = vmul.f32 %v183, %v187
  %vm189 = vweird.f32 %v182
  %vm190 = vweird.f32 %v183
  %vm191 = vmor %vm189, %vm190
  %v192 = vsel %vm191, %v183, %v188
  %v193 = vmul.f32 %v176, %v192
  %v194 = vmul.f32 %v193, %v35
  %v195 = vadd.f32 %v194, %v36
  %v196 = vmul.f32 %v195, 1.442695
  %v197 = vpow.pop %v196
  %v198 = vadd.f32 %v197, %v34
  %v199 = vmax.f32 %v198, 0.0
  %v201 = vsel %vm42, %v199, 0
  %203 = vmatpush.msra.mxu0 0.0
  %204 = vmatpush.msra.mxu0 0.0
  %205 = vmatpush.msra.mxu0 0.0
  %206 = vmatpush.msra.mxu0 0.0
  %207 = vmatpush.msra.mxu0 0.0
  %208 = vmatpush.msra.mxu0 0.0
  %209 = vmatpush.msra.mxu0 0.0
  %210 = vmatpush.msra.mxu0 0.0
  %211 = vmatpush.msra.mxu0 0.0
  %212 = vmatpush.msra.mxu0 0.0
  %213 = vmatpush.msra.mxu0 0.0
  %214 = vmatpush.msra.mxu0 0.0
  %215 = vmatpush.msra.mxu0 %v28
  %216 = vmatpush.msra.mxu0 %v27
  %217 = vmatpush.msra.mxu0 %v26
  %218 = vmatpush.msra.mxu0 %v25
  %219 = vmatmul.f32.gmra.mxu0 %v201
  %v220 = vpop.f32.mrf.mxu0
  %v221 = vadd.f32 0.0, %v220
  %222 = vdwg.mxu0
  %v223 = vmax.f32 %v170, %v221
  %v224 = vadd.f32 %v223, %v37
  %vm225 = vcmask 64512
  %v227 = vsel %vm225, %v29, 0
  %v230 = vsel %vm225, %v30, 0
  %v233 = vsel %vm225, %v31, 0
  %v236 = vsel %vm225, %v32, 0
  %238 = vmatpush.msra.mxu0 0.0
  %239 = vmatpush.msra.mxu0 0.0
  %240 = vmatpush.msra.mxu0 0.0
  %241 = vmatpush.msra.mxu0 0.0
  %242 = vmatpush.msra.mxu0 0.0
  %243 = vmatpush.msra.mxu0 0.0
  %244 = vmatpush.msra.mxu0 0.0
  %245 = vmatpush.msra.mxu0 0.0
  %246 = vmatpush.msra.mxu0 0.0
  %247 = vmatpush.msra.mxu0 0.0
  %248 = vmatpush.msra.mxu0 0.0
  %249 = vmatpush.msra.mxu0 0.0
  %250 = vmatpush.msra.mxu0 0.0
  %251 = vmatpush.msra.mxu0 0.0
  %252 = vmatpush.msra.mxu0 0.0
  %253 = vmatpush.msra.mxu0 %v224
  %254 = vmatmul.f32.gmra.mxu0 %v227
  %v255 = vpop.f32.mrf.mxu0
  %v256 = vadd.f32 0.0, %v255
  %257 = vmatmul.f32.gmra.mxu0 %v230
  %v258 = vpop.f32.mrf.mxu0
  %v259 = vadd.f32 0.0, %v258
  %260 = vmatmul.f32.gmra.mxu0 %v233
  %v261 = vpop.f32.mrf.mxu0
  %v262 = vadd.f32 0.0, %v261
  %263 = vmatmul.f32.gmra.mxu0 %v236
  %v264 = vpop.f32.mrf.mxu0
  %v265 = vadd.f32 0.0, %v264
  %266 = vdwg.mxu0
  %v267 = vsel %vm225, %v256, 0.0
  %268 = vadd.xlane.f32.xlu0 %v267
  %v269 = vpop.xlane.xlu0 %268
  %v270 = vsel %vm225, %v259, 0.0
  %271 = vadd.xlane.f32.xlu0 %v270
  %v272 = vpop.xlane.xlu0 %271
  %v273 = vsel %vm225, %v262, 0.0
  %274 = vadd.xlane.f32.xlu0 %v273
  %v275 = vpop.xlane.xlu0 %274
  %vm276 = vcmask 62464
  %v277 = vsel %vm276, %v265, 0.0
  %278 = vadd.xlane.f32.xlu0 %v277
  %v279 = vpop.xlane.xlu0 %278
  %v280 = vrcp.pop 8.0
  %v281 = vmul.f32 8.0, %v280
  %v282 = vsub.f32 1.0, %v281
  %v283 = vmul.f32 %v280, %v282
  %v284 = vadd.f32 %v280, %v283
  %vm285 = vweird.f32 %v280
  %v286 = vsel %vm285, %v280, %v284
  %v287 = vmul.f32 %v269, %v286
  %v288 = vmul.f32 %v272, %v286
  %v289 = vmul.f32 %v275, %v286
  %v290 = vmul.f32 %v279, %v286
  %v291 = vsub.f32 %v256, %v287
  %v292 = vsub.f32 %v259, %v288
  %v293 = vsub.f32 %v262, %v289
  %v294 = vsub.f32 %v265, %v290
  %v295 = vmul.f32 %v291, %v291
  %v296 = vmul.f32 %v292, %v292
  %v297 = vmul.f32 %v293, %v293
  %v298 = vmul.f32 %v294, %v294
  %v299 = vsel %vm225, %v295, 0.0
  %300 = vadd.xlane.f32.xlu0 %v299
  %v301 = vpop.xlane.xlu0 %300
  %v302 = vsel %vm225, %v296, 0.0
  %303 = vadd.xlane.f32.xlu0 %v302
  %v304 = vpop.xlane.xlu0 %303
  %v305 = vsel %vm225, %v297, 0.0
  %306 = vadd.xlane.f32.xlu0 %v305
  %v307 = vpop.xlane.xlu0 %306
  %v308 = vsel %vm276, %v298, 0.0
  %309 = vadd.xlane.f32.xlu0 %v308
  %v310 = vpop.xlane.xlu0 %309
  %v311 = vmul.f32 %v301, %v286
  %v312 = vmul.f32 %v304, %v286
  %v313 = vmul.f32 %v307, %v286
  %v314 = vmul.f32 %v310, %v286
  %v315 = vadd.f32 %v311, 1e-05
  %v316 = vadd.f32 %v312, 1e-05
  %v317 = vadd.f32 %v313, 1e-05
  %v318 = vadd.f32 %v314, 1e-05
  %v319 = vrsqrt.pop %v315
  %v320 = vmul.f32 %v319, %v315
  %v321 = vmul.f32 %v320, %v319
  %v322 = vmul.f32 0.5, %v321
  %v323 = vsub.f32 1.5, %v322
  %v324 = vmul.f32 %v319, %v323
  %vm325 = vweird.f32 %v315
  %vm326 = vweird.f32 %v319
  %vm327 = vmor %vm325, %vm326
  %v328 = vsel %vm327, %v319, %v324
  %v329 = vrsqrt.pop %v316
  %v330 = vmul.f32 %v329, %v316
  %v331 = vmul.f32 %v330, %v329
  %v332 = vmul.f32 0.5, %v331
  %v333 = vsub.f32 1.5, %v332
  %v334 = vmul.f32 %v329, %v333
  %vm335 = vweird.f32 %v316
  %vm336 = vweird.f32 %v329
  %vm337 = vmor %vm335, %vm336
  %v338 = vsel %vm337, %v329, %v334
  %v339 = vrsqrt.pop %v317
  %v340 = vmul.f32 %v339, %v317
  %v341 = vmul.f32 %v340, %v339
  %v342 = vmul.f32 0.5, %v341
  %v343 = vsub.f32 1.5, %v342
  %v344 = vmul.f32 %v339, %v343
  %vm345 = vweird.f32 %v317
  %vm346 = vweird.f32 %v339
  %vm347 = vmor %vm345, %vm346
  %v348 = vsel %vm347, %v339, %v344
  %v349 = vrsqrt.pop %v318
  %v350 = vmul.f32 %v349, %v318
  %v351 = vmul.f32 %v350, %v349
  %v352 = vmul.f32 0.5, %v351
  %v353 = vsub.f32 1.5, %v352
  %v354 = vmul.f32 %v349, %v353
  %vm355 = vweird.f32 %v318
  %vm356 = vweird.f32 %v349
  %vm357 = vmor %vm355, %vm356
  %v358 = vsel %vm357, %v349, %v354
  %v359 = vmul.f32 %v291, %v328
  %v360 = vmul.f32 %v292, %v338
  %v361 = vmul.f32 %v293, %v348
  %v362 = vmul.f32 %v294, %v358
  %v363 = vmul.f32 %v359, %v38
  %v364 = vmul.f32 %v360, %v38
  %v365 = vmul.f32 %v361, %v38
  %v366 = vmul.f32 %v362, %v38
  %v367 = vadd.f32 %v363, %v39
  %v368 = vadd.f32 %v364, %v39
  %v369 = vadd.f32 %v365, %v39
  %v370 = vadd.f32 %v366, %v39
  %371 = vst.msk [vmem:[%s5] sm:$0xff] %vm225, %v367
  %372 = vst.msk [vmem:[%s5 + $0x8] sm:$0xff] %vm225, %v368
  %373 = vst.msk [vmem:[%s5 + $0x10] sm:$0xff] %vm225, %v369
  %374 = vst.msk [vmem:[%s5 + $0x18] sm:$0x3f] %vm276, %v370
  // Predicated region
  $region22: #{tpu_custom_call.1} parent=0 // pred_check
    _
  $region23: #{tpu_custom_call.1} parent=0 // pred_check_branch
    %376 = sbr.rel (0) target = $region25
  $region24: #{tpu_custom_call.1} parent=0 // pred_region
    _
  $region25: #{tpu_custom_call.1} parent=0 // pred_fallthru
    _
  // Predicated region
  $region26: #{tpu_custom_call.1} parent=0 // pred_check
    _
  $region27: #{tpu_custom_call.1} parent=0 // pred_check_branch
    %378 = sbr.rel (0) target = $region29
  $region28: #{tpu_custom_call.1} parent=0 // pred_region
    _
  $region29: #{tpu_custom_call.1} parent=0 // pred_fallthru
    _

</llo_original>
